<compile_context>
chip_gen: v6e
topology: v6e:2x2x1
jax: 0.10.0
libtpu: 0.0.40
codegen_flags: <defaults>
</compile_context>

<pallas_src>
import jax
import jax.numpy as jnp
import numpy as np
from jax import lax
from jax.experimental import pallas as pl
from jax.experimental.pallas import tpu as pltpu  # noqa: F401 (kept for parity)

# ---- hyperparameters (small, consistent with the module) -------------------
B = 2          # batch
T = 8          # sequence length (block_size)
N_EMBD = 32    # embedding dim (n_embd)
N_HEAD = 4     # number of heads
HEAD_SIZE = 8  # per-head dim
DROPOUT = 0.0  # TODO(synk): dropout is a no-op here (inference semantics)

BT = B * T                      # 16 rows processed in one shot
HBT = N_HEAD * BT               # 64 head-stacked rows
QOFF = 0                        # fused-weight column offsets ({q,k,v'}-major)
KOFF = N_HEAD * HEAD_SIZE       # 32
VOFF = 2 * N_HEAD * HEAD_SIZE   # 64
FUSED_W = VOFF + N_HEAD * N_EMBD  # 192 fused output columns
NEG_INF = -1e30


def _mha_kernel(x_ref, wqkv_ref, maskb_ref, b_ref, o_ref):
    # x_ref: (B*T, C); wqkv_ref: (C, 2*H*hs + H*C); maskb_ref: (H*B*T, H*B*T);
    # b_ref: (1, C); o_ref: (B*T, C).
    x = x_ref[...]

    # --- ONE fused QKV' projection on the MXU (scale folded into Q columns,
    # --- Wp folded into the V' columns) --------------------------------------
    qkv = jnp.dot(x, wqkv_ref[...], preferred_element_type=jnp.float32)  # (BT, 192)

    # --- head-stacked operands built IN REGISTERS (no VMEM scratch roundtrip).
    # row r of the stacked matrices = (h*B + b)*T + t.
    qs = jnp.concatenate(
        [qkv[:, QOFF + h * HEAD_SIZE: QOFF + (h + 1) * HEAD_SIZE]
         for h in range(N_HEAD)], axis=0)                                # (HBT, hs)
    ks = jnp.concatenate(
        [qkv[:, KOFF + h * HEAD_SIZE: KOFF + (h + 1) * HEAD_SIZE]
         for h in range(N_HEAD)], axis=0)                                # (HBT, hs)
    vps = jnp.concatenate(
        [qkv[:, VOFF + h * N_EMBD: VOFF + (h + 1) * N_EMBD]
         for h in range(N_HEAD)], axis=0)                                # (HBT, C)

    # --- ONE score matmul with the transpose folded into the MXU operand path.
    s = lax.dot_general(qs, ks, (((1,), (1,)), ((), ())),
                        preferred_element_type=jnp.float32)              # (HBT, HBT)

    # --- static additive mask bias (block-diagonal same-head/same-batch AND
    # --- causal): one VPU add instead of iota/div/mod/compare/select chain.
    s = s + maskb_ref[...]

    # --- ONE softmax chain (exact divide to stay within 1e-5 test tolerance).
    m = jnp.max(s, axis=-1, keepdims=True)
    e = jnp.exp(s - m)
    wei = e / jnp.sum(e, axis=-1, keepdims=True)

    # --- ONE attention @ V' matmul: per-head row blocks are ALREADY projected
    # --- to (BT, C) because Wp was folded into V' at weight-prep time.
    att = jnp.dot(wei, vps, preferred_element_type=jnp.float32)          # (HBT, C)

    # --- sum of per-head row blocks == concat(heads) @ Wp; 3 VPU adds + bias.
    out = (att[0:BT, :] + att[BT:2 * BT, :]
           + att[2 * BT:3 * BT, :] + att[3 * BT:4 * BT, :])
    o_ref[...] = (out + b_ref[...]).astype(o_ref.dtype)


def prepare_fused_weights(wq, wk, wv, wp):
    """One-time weight fusion (hoisted out of the per-call path).

    wq/wk/wv: (n_head, C, hs); wp: (n_head*hs, C)  ->  (C, 2*H*hs + H*C).
    Columns are {q, k, v'}-major so in-kernel slices start at lanes 0/32/64.
    """
    scale = 1.0 / np.sqrt(HEAD_SIZE)
    wq_f = jnp.concatenate([wq[h] * scale for h in range(N_HEAD)], axis=-1)   # (C, H*hs)
    wk_f = jnp.concatenate([wk[h] for h in range(N_HEAD)], axis=-1)           # (C, H*hs)
    # V'_h = Wv_h @ Wp_h : fold the output projection into the value weights.
    wvp_f = jnp.concatenate(
        [wv[h] @ wp[h * HEAD_SIZE:(h + 1) * HEAD_SIZE, :] for h in range(N_HEAD)],
        axis=-1)                                                              # (C, H*C)
    return jnp.concatenate([wq_f, wk_f, wvp_f], axis=-1)                      # (C, 192)


def build_mask_bias():
    """Static additive bias: 0 where (same head-batch block AND causal), -1e30 else."""
    r = np.arange(HBT)[:, None]
    c = np.arange(HBT)[None, :]
    allowed = (r // T == c // T) & ((r % T) >= (c % T))
    return jnp.asarray(np.where(allowed, 0.0, NEG_INF), dtype=jnp.float32)


@jax.jit
def multi_head_attention(x, wqkv, mask_bias, bias):
    """x: (B,T,C) f32; wqkv: fused (C, 192); mask_bias: (HBT, HBT); bias: (C,)."""
    Bb, Tt, Cc = x.shape
    x2d = x.reshape(Bb * Tt, Cc)          # one slab: one DMA in, one DMA out
    bias2d = bias.reshape(1, Cc)

    out2d = pl.pallas_call(
        _mha_kernel,
        out_shape=jax.ShapeDtypeStruct((Bb * Tt, Cc), x.dtype),
        # No grid: the whole (tiny) problem is a single pipeline step; every
        # operand is mapped whole into VMEM (a few KB << VMEM on any gen).
    )(x2d, wqkv, mask_bias, bias2d)
    return out2d.reshape(Bb, Tt, Cc)


def reference(x, wq, wk, wv, wp, bias):
    """Pure-JAX reference matching the PyTorch module semantics."""
    scale = 1.0 / np.sqrt(HEAD_SIZE)
    outs = []
    mask = np.tril(np.ones((T, T), dtype=bool))
    for h in range(N_HEAD):
        q = x @ wq[h]
        k = x @ wk[h]
        v = x @ wv[h]
        s = (q @ jnp.swapaxes(k, -1, -2)) * scale
        s = jnp.where(mask, s, -jnp.inf)
        w = jax.nn.softmax(s, axis=-1)
        outs.append(w @ v)
    cat = jnp.concatenate(outs, axis=-1)
    return cat @ wp + bias


if __name__ == "__main__":
    key = jax.random.PRNGKey(0)
    kx, kq, kk, kv, kp, kb = jax.random.split(key, 6)

    x = jax.random.normal(kx, (B, T, N_EMBD), dtype=jnp.float32)
    # deterministic parameter init (small scale, Linear-like)
    wq = jax.random.normal(kq, (N_HEAD, N_EMBD, HEAD_SIZE), dtype=jnp.float32) * 0.1
    wk = jax.random.normal(kk, (N_HEAD, N_EMBD, HEAD_SIZE), dtype=jnp.float32) * 0.1
    wv = jax.random.normal(kv, (N_HEAD, N_EMBD, HEAD_SIZE), dtype=jnp.float32) * 0.1
    wp = jax.random.normal(kp, (N_HEAD * HEAD_SIZE, N_EMBD), dtype=jnp.float32) * 0.1
    bias = jax.random.normal(kb, (N_EMBD,), dtype=jnp.float32) * 0.1

    # One-time weight fusion and mask precompute (out of the per-call path).
    wqkv = jax.block_until_ready(prepare_fused_weights(wq, wk, wv, wp))
    mask_bias = jax.block_until_ready(build_mask_bias())

    out = multi_head_attention(x, wqkv, mask_bias, bias)
    out = jax.block_until_ready(out)

    ref = reference(x, wq, wk, wv, wp, bias)
    np.testing.assert_allclose(np.asarray(out), np.asarray(ref), rtol=1e-5, atol=1e-5)

    print("KERNEL_OK")
</pallas_src>

<mosaic_0001>
module attributes {stable_mosaic.version = 11 : i64} {
  func.func @_mha_kernel(%arg0: memref<16x32xf32, #tpu.memory_space<vmem>>, %arg1: memref<32x192xf32, #tpu.memory_space<vmem>>, %arg2: memref<64x64xf32, #tpu.memory_space<vmem>>, %arg3: memref<1x32xf32, #tpu.memory_space<vmem>>, %arg4: memref<16x32xf32, #tpu.memory_space<vmem>>) attributes {dimension_semantics = [], scalar_prefetch = 0 : i64, scratch_operands = 0 : i64, tpu.core_type = #tpu.core_type<tc>} {
    %c0 = arith.constant 0 : index
    %c0_0 = arith.constant 0 : index
    %0 = vector.load %arg0[%c0, %c0_0] : memref<16x32xf32, #tpu.memory_space<vmem>>, vector<16x32xf32>
    %c0_1 = arith.constant 0 : index
    %c0_2 = arith.constant 0 : index
    %1 = vector.load %arg1[%c0_1, %c0_2] : memref<32x192xf32, #tpu.memory_space<vmem>>, vector<32x192xf32>
    %cst = arith.constant dense<0.000000e+00> : vector<16x192xf32>
    %2 = tpu.matmul %0, %1, %cst {dimension_numbers = #tpu.dot_dimension_numbers<[1], [0], [0], [1], [0, 0, 1, 1], [], []>} : vector<16x32xf32>, vector<32x192xf32>, vector<16x192xf32> -> vector<16x192xf32>
    %3 = vector.extract_strided_slice %2 {offsets = [0, 0], sizes = [16, 8], strides = [1, 1]} : vector<16x192xf32> to vector<16x8xf32>
    %4 = vector.extract_strided_slice %2 {offsets = [0, 8], sizes = [16, 8], strides = [1, 1]} : vector<16x192xf32> to vector<16x8xf32>
    %5 = vector.extract_strided_slice %2 {offsets = [0, 16], sizes = [16, 8], strides = [1, 1]} : vector<16x192xf32> to vector<16x8xf32>
    %6 = vector.extract_strided_slice %2 {offsets = [0, 24], sizes = [16, 8], strides = [1, 1]} : vector<16x192xf32> to vector<16x8xf32>
    %7 = tpu.concatenate %3, %4, %5, %6 in 0 : vector<16x8xf32>, vector<16x8xf32>, vector<16x8xf32>, vector<16x8xf32> -> vector<64x8xf32>
    %8 = vector.extract_strided_slice %2 {offsets = [0, 32], sizes = [16, 8], strides = [1, 1]} : vector<16x192xf32> to vector<16x8xf32>
    %9 = vector.extract_strided_slice %2 {offsets = [0, 40], sizes = [16, 8], strides = [1, 1]} : vector<16x192xf32> to vector<16x8xf32>
    %10 = vector.extract_strided_slice %2 {offsets = [0, 48], sizes = [16, 8], strides = [1, 1]} : vector<16x192xf32> to vector<16x8xf32>
    %11 = vector.extract_strided_slice %2 {offsets = [0, 56], sizes = [16, 8], strides = [1, 1]} : vector<16x192xf32> to vector<16x8xf32>
    %12 = tpu.concatenate %8, %9, %10, %11 in 0 : vector<16x8xf32>, vector<16x8xf32>, vector<16x8xf32>, vector<16x8xf32> -> vector<64x8xf32>
    %13 = vector.extract_strided_slice %2 {offsets = [0, 64], sizes = [16, 32], strides = [1, 1]} : vector<16x192xf32> to vector<16x32xf32>
    %14 = vector.extract_strided_slice %2 {offsets = [0, 96], sizes = [16, 32], strides = [1, 1]} : vector<16x192xf32> to vector<16x32xf32>
    %15 = vector.extract_strided_slice %2 {offsets = [0, 128], sizes = [16, 32], strides = [1, 1]} : vector<16x192xf32> to vector<16x32xf32>
    %16 = vector.extract_strided_slice %2 {offsets = [0, 160], sizes = [16, 32], strides = [1, 1]} : vector<16x192xf32> to vector<16x32xf32>
    %17 = tpu.concatenate %13, %14, %15, %16 in 0 : vector<16x32xf32>, vector<16x32xf32>, vector<16x32xf32>, vector<16x32xf32> -> vector<64x32xf32>
    %cst_3 = arith.constant dense<0.000000e+00> : vector<64x64xf32>
    %18 = tpu.matmul %7, %12, %cst_3 {dimension_numbers = #tpu.dot_dimension_numbers<[1], [1], [0], [0], [0, 0, 1, 0], [], []>} : vector<64x8xf32>, vector<64x8xf32>, vector<64x64xf32> -> vector<64x64xf32>
    %c0_4 = arith.constant 0 : index
    %c0_5 = arith.constant 0 : index
    %19 = vector.load %arg2[%c0_4, %c0_5] : memref<64x64xf32, #tpu.memory_space<vmem>>, vector<64x64xf32>
    %20 = arith.addf %18, %19 : vector<64x64xf32>
    %cst_6 = arith.constant dense<0xFF800000> : vector<64xf32>
    %21 = vector.multi_reduction <maximumf>, %20, %cst_6 [1] : vector<64x64xf32> to vector<64xf32>
    %22 = vector.shape_cast %21 : vector<64xf32> to vector<64x1xf32>
    %23 = vector.broadcast %22 : vector<64x1xf32> to vector<64x64xf32>
    %24 = arith.subf %20, %23 : vector<64x64xf32>
    %25 = math.exp %24 : vector<64x64xf32>
    %cst_7 = arith.constant dense<0.000000e+00> : vector<64xf32>
    %26 = vector.multi_reduction <add>, %25, %cst_7 [1] : vector<64x64xf32> to vector<64xf32>
    %27 = vector.shape_cast %26 : vector<64xf32> to vector<64x1xf32>
    %28 = vector.broadcast %27 : vector<64x1xf32> to vector<64x64xf32>
    %29 = arith.divf %25, %28 : vector<64x64xf32>
    %cst_8 = arith.constant dense<0.000000e+00> : vector<64x32xf32>
    %30 = tpu.matmul %29, %17, %cst_8 {dimension_numbers = #tpu.dot_dimension_numbers<[1], [0], [0], [1], [0, 0, 1, 1], [], []>} : vector<64x64xf32>, vector<64x32xf32>, vector<64x32xf32> -> vector<64x32xf32>
    %31 = vector.extract_strided_slice %30 {offsets = [0, 0], sizes = [16, 32], strides = [1, 1]} : vector<64x32xf32> to vector<16x32xf32>
    %32 = vector.extract_strided_slice %30 {offsets = [16, 0], sizes = [16, 32], strides = [1, 1]} : vector<64x32xf32> to vector<16x32xf32>
    %33 = arith.addf %31, %32 : vector<16x32xf32>
    %34 = vector.extract_strided_slice %30 {offsets = [32, 0], sizes = [16, 32], strides = [1, 1]} : vector<64x32xf32> to vector<16x32xf32>
    %35 = arith.addf %33, %34 : vector<16x32xf32>
    %36 = vector.extract_strided_slice %30 {offsets = [48, 0], sizes = [16, 32], strides = [1, 1]} : vector<64x32xf32> to vector<16x32xf32>
    %37 = arith.addf %35, %36 : vector<16x32xf32>
    %c0_9 = arith.constant 0 : index
    %c0_10 = arith.constant 0 : index
    %38 = vector.load %arg3[%c0_9, %c0_10] : memref<1x32xf32, #tpu.memory_space<vmem>>, vector<1x32xf32>
    %39 = vector.broadcast %38 : vector<1x32xf32> to vector<16x32xf32>
    %40 = arith.addf %37, %39 : vector<16x32xf32>
    %c0_11 = arith.constant 0 : index
    %c0_12 = arith.constant 0 : index
    %41 = vector.load %arg4[%c0_11, %c0_12] : memref<16x32xf32, #tpu.memory_space<vmem>>, vector<16x32xf32>
    tpu.vector_store %arg4[%c0_11, %c0_12], %40 {strides = array<i32>} : memref<16x32xf32, #tpu.memory_space<vmem>>, vector<16x32xf32>,
    return
  }
}

</mosaic_0001>

<llo_original>
// kernel: multi_head_attention.1
$region0: #{multi_head_attention.1}
  #allocation0 [shape = 'u32[]', space=smem, size = 0x4, offset = 0x4, fixed_abs, tag = 'smem constant byte address 0x4 - core index']
  #allocation1 [shape = 'u32[144,128]{1,0:T(1,128)}', space=vmem, size = 0x12000, scoped, tag = 'internal scratch']
  %s0 = inlined_call_operand.hbm [shape: f32[16,32], index: 0, kind: input, shape index: {}]
  %s1 = inlined_call_operand.hbm [shape: f32[32,192], index: 1, kind: input, shape index: {}]
  %s2 = inlined_call_operand.hbm [shape: f32[64,64], index: 2, kind: input, shape index: {}]
  %s3 = inlined_call_operand.vmem [shape: f32[1,32], index: 3, kind: input, shape index: {}]
  %s4 = inlined_call_operand.hbm [shape: f32[16,32], index: 4, kind: output, shape index: {}]
  %s5 = sld [smem:[#allocation0]]
  $region38: #{multi_head_attention.1} parent=0
    _
  %s7 = ssub.s32 1, %s5
  %s8 = scalar_select 0, %s7, %s5
  $region1: #{multi_head_attention.1} parent=0
    #allocation2 [shape = 'u8[8192]{0}', space=vmem, size = 0x2000, scoped, tag = 'input window, operand 0, single buffered']
    #allocation3 [shape = 's32[1]{0}', space=sflag, size = 0x4, scoped, tag = 'scoped memory for multi_head_attention.1']
    #allocation4 [shape = 's32[1]{0}', space=sflag, size = 0x4, scoped, tag = 'scoped memory for multi_head_attention.1']
    #allocation5 [shape = 'u8[32768]{0}', space=vmem, size = 0x8000, scoped, tag = 'input window, operand 1, single buffered']
    #allocation6 [shape = 's32[1]{0}', space=sflag, size = 0x4, scoped, tag = 'scoped memory for multi_head_attention.1']
    #allocation7 [shape = 'u8[32768]{0}', space=vmem, size = 0x8000, scoped, tag = 'input window, operand 2, single buffered']
    #allocation8 [shape = 'u8[8192]{0}', space=vmem, size = 0x2000, scoped, tag = 'output window, operand 0, single buffered']
    %9 = vsyncpa [#allocation3], 0
    %10 = vsyncpa [#allocation6], 0
    %11 = vsyncpa [#allocation4], 0
    // Predicated region
    $region2: #{multi_head_attention.1} parent=1 // pred_check
      _
    $region3: #{multi_head_attention.1} parent=1 // pred_check_branch
      %13 = sbr.rel (0) target = $region5
    $region4: #{multi_head_attention.1} parent=1 // pred_region
      %s15 = ssub.s32 256, 256
      %16 = vsyncadd [#allocation3], %s15
      %s17 = sshll.u32 [#allocation2], 4
      %s18 = int_to_ptr.vmem [resolvable:$true] %s17
      %23 = dma.hbm_to_vmem [thread:$0]  %s0, 256, %s18, [#allocation3], 128, 128, 8
    $region5: #{multi_head_attention.1} parent=1 // pred_fallthru
      _
    // Predicated region
    $region6: #{multi_head_attention.1} parent=1 // pred_check
      _
    $region7: #{multi_head_attention.1} parent=1 // pred_check_branch
      %25 = sbr.rel (0) target = $region9
    $region8: #{multi_head_attention.1} parent=1 // pred_region
      %s27 = ssub.s32 1024, 1024
      %28 = vsyncadd [#allocation6], %s27
      %s29 = sshll.u32 [#allocation5], 4
      %s30 = int_to_ptr.vmem [resolvable:$true] %s29
      %35 = dma.hbm_to_vmem [thread:$0]  %s1, 1024, %s30, [#allocation6], 256, 256, 16
    $region9: #{multi_head_attention.1} parent=1 // pred_fallthru
      _
    // Predicated region
    $region10: #{multi_head_attention.1} parent=1 // pred_check
      _
    $region11: #{multi_head_attention.1} parent=1 // pred_check_branch
      %37 = sbr.rel (0) target = $region13
    $region12: #{multi_head_attention.1} parent=1 // pred_region
      %s39 = ssub.s32 1024, 1024
      %40 = vsyncadd [#allocation6], %s39
      %s41 = sshll.u32 [#allocation7], 4
      %s42 = int_to_ptr.vmem [resolvable:$true] %s41
      %47 = dma.hbm_to_vmem [thread:$0]  %s2, 1024, %s42, [#allocation6], 128, 128, 8
    $region13: #{multi_head_attention.1} parent=1 // pred_fallthru
      _
    // Predicated region
    $region14: #{multi_head_attention.1} parent=1 // pred_check
      _
    $region15: #{multi_head_attention.1} parent=1 // pred_check_branch
      %49 = sbr.rel (0) target = $region17
    $region16: #{multi_head_attention.1} parent=1 // pred_region
      _
    $region17: #{multi_head_attention.1} parent=1 // pred_fallthru
      _
    // Predicated region
    $region18: #{multi_head_attention.1} parent=1 // pred_check
      _
    $region19: #{multi_head_attention.1} parent=1 // pred_check_branch
      %51 = sbr.rel (0) target = $region21
    $region20: #{multi_head_attention.1} parent=1 // pred_region
      %52 = dma.done [#allocation3], 256
    $region21: #{multi_head_attention.1} parent=1 // pred_fallthru
      _
    // Predicated region
    $region22: #{multi_head_attention.1} parent=1 // pred_check
      _
    $region23: #{multi_head_attention.1} parent=1 // pred_check_branch
      %54 = sbr.rel (0) target = $region25
    $region24: #{multi_head_attention.1} parent=1 // pred_region
      %55 = dma.done [#allocation6], 1024
    $region25: #{multi_head_attention.1} parent=1 // pred_fallthru
      _
    // Predicated region
    $region26: #{multi_head_attention.1} parent=1 // pred_check
      _
    $region27: #{multi_head_attention.1} parent=1 // pred_check_branch
      %57 = sbr.rel (0) target = $region29
    $region28: #{multi_head_attention.1} parent=1 // pred_region
      %58 = dma.done [#allocation6], 1024
    $region29: #{multi_head_attention.1} parent=1 // pred_fallthru
      _
    %v59 = vld [vmem:[#allocation2] sm:$0xff]
    %v60 = vld [vmem:[#allocation2 + $0x8] sm:$0xff]
    %v61 = vld [vmem:[#allocation5] sm:$0xff]
    %v62 = vld [vmem:[#allocation5 + $0x8] sm:$0xff]
    %v63 = vld [vmem:[#allocation5 + $0x10] sm:$0xff]
    %v64 = vld [vmem:[#allocation5 + $0x18] sm:$0xff]
    %v65 = vld [vmem:[#allocation5 + $0x20] sm:$0xff]
    %v66 = vld [vmem:[#allocation5 + $0x28] sm:$0xff]
    %v67 = vld [vmem:[#allocation5 + $0x30] sm:$0xff]
    %v68 = vld [vmem:[#allocation5 + $0x38] sm:$0xff]
    %vm69 = vcmask 261120
    %v71 = vsel %vm69, %v59, 0
    %v74 = vsel %vm69, %v60, 0
    %76 = vmatprep.subr.mxu0 0.0
    %77 = vmatpush1.msra.mxu0 0.0
    %78 = vmatprep.subr.mxu0 0.0
    %79 = vmatpush1.msra.mxu0 0.0
    %80 = vmatprep.subr.mxu0 0.0
    %81 = vmatpush1.msra.mxu0 0.0
    %82 = vmatprep.subr.mxu0 0.0
    %83 = vmatpush1.msra.mxu0 0.0
    %84 = vmatprep.subr.mxu0 0.0
    %85 = vmatpush1.msra.mxu0 0.0
    %86 = vmatprep.subr.mxu0 0.0
    %87 = vmatpush1.msra.mxu0 0.0
    %88 = vmatprep.subr.mxu0 0.0
    %89 = vmatpush1.msra.mxu0 0.0
    %90 = vmatprep.subr.mxu0 0.0
    %91 = vmatpush1.msra.mxu0 0.0
    %92 = vmatprep.subr.mxu0 0.0
    %93 = vmatpush1.msra.mxu0 0.0
    %94 = vmatprep.subr.mxu0 0.0
    %95 = vmatpush1.msra.mxu0 0.0
    %96 = vmatprep.subr.mxu0 0.0
    %97 = vmatpush1.msra.mxu0 0.0
    %98 = vmatprep.subr.mxu0 0.0
    %99 = vmatpush1.msra.mxu0 0.0
    %100 = vmatprep.subr.mxu0 %v68
    %101 = vmatpush1.msra.mxu0 %v67
    %102 = vmatprep.subr.mxu0 %v66
    %103 = vmatpush1.msra.mxu0 %v65
    %104 = vmatprep.subr.mxu0 %v64
    %105 = vmatpush1.msra.mxu0 %v63
    %106 = vmatprep.subr.mxu0 %v62
    %107 = vmatpush1.msra.mxu0 %v61
    %108 = vmatprep.subr.mxu0 0.0
    %109 = vmatpush2.msra.mxu0 0.0
    %110 = vmatprep.subr.mxu0 0.0
    %111 = vmatpush2.msra.mxu0 0.0
    %112 = vmatprep.subr.mxu0 0.0
    %113 = vmatpush2.msra.mxu0 0.0
    %114 = vmatprep.subr.mxu0 0.0
    %115 = vmatpush2.msra.mxu0 0.0
    %116 = vmatprep.subr.mxu0 0.0
    %117 = vmatpush2.msra.mxu0 0.0
    %118 = vmatprep.subr.mxu0 0.0
    %119 = vmatpush2.msra.mxu0 0.0
    %120 = vmatprep.subr.mxu0 0.0
    %121 = vmatpush2.msra.mxu0 0.0
    %122 = vmatprep.subr.mxu0 0.0
    %123 = vmatpush2.msra.mxu0 0.0
    %124 = vmatprep.subr.mxu0 0.0
    %125 = vmatpush2.msra.mxu0 0.0
    %126 = vmatprep.subr.mxu0 0.0
    %127 = vmatpush2.msra.mxu0 0.0
    %128 = vmatprep.subr.mxu0 0.0
    %129 = vmatpush2.msra.mxu0 0.0
    %130 = vmatprep.subr.mxu0 0.0
    %131 = vmatpush2.msra.mxu0 0.0
    %132 = vmatprep.subr.mxu0 0.0
    %133 = vmatpush2.msra.mxu0 0.0
    %134 = vmatprep.subr.mxu0 0.0
    %135 = vmatpush2.msra.mxu0 0.0
    %136 = vmatprep.subr.mxu0 0.0
    %137 = vmatpush2.msra.mxu0 0.0
    %138 = vmatprep.subr.mxu0 0.0
    %139 = vmatpush2.msra.mxu0 0.0
    %140 = vmatprep.mubr.f32.mxu0 0.0
    %141 = vmatmul.mubr.f32.gmra.mxu0 %v71
    %v142 = vpop.f32.mrf.mxu0
    %v143 = vadd.f32 0.0, %v142
    %v144 = vpop.f32.mrf.mxu0
    %v145 = vadd.f32 0.0, %v144
    %146 = vmatprep.mubr.f32.mxu0 0.0
    %147 = vmatmul.mubr.f32.gmra.mxu0 %v74
    %v148 = vpop.f32.mrf.mxu0
    %v149 = vadd.f32 0.0, %v148
    %v150 = vpop.f32.mrf.mxu0
    %v151 = vadd.f32 0.0, %v150
    %152 = vdwg.mxu0
    %155 = vrot.lane.b32.xlu0 %v143, 120
    %v156 = vpop.permute.xlu0 %155
    %157 = vrot.lane.b32.xlu0 %v149, 120
    %v158 = vpop.permute.xlu0 %157
    %159 = vrot.lane.b32.xlu0 %v143, 112
    %v160 = vpop.permute.xlu0 %159
    %161 = vrot.lane.b32.xlu0 %v149, 112
    %v162 = vpop.permute.xlu0 %161
    %163 = vrot.lane.b32.xlu0 %v143, 104
    %v164 = vpop.permute.xlu0 %163
    %165 = vrot.lane.b32.xlu0 %v149, 104
    %v166 = vpop.permute.xlu0 %165
    %167 = vrot.lane.b32.xlu0 %v143, 96
    %v168 = vpop.permute.xlu0 %167
    %169 = vrot.lane.b32.xlu0 %v149, 96
    %v170 = vpop.permute.xlu0 %169
    %173 = vrot.lane.b32.xlu0 %v145, 64
    %v174 = vpop.permute.xlu0 %173
    %175 = vrot.lane.b32.xlu0 %v151, 64
    %v176 = vpop.permute.xlu0 %175
    %177 = vrot.lane.b32.xlu0 %v145, 32
    %v178 = vpop.permute.xlu0 %177
    %179 = vrot.lane.b32.xlu0 %v151, 32
    %v180 = vpop.permute.xlu0 %179
    %v181 = vld [vmem:[#allocation7] sm:$0xff]
    %v182 = vld [vmem:[#allocation7 + $0x8] sm:$0xff]
    %v183 = vld [vmem:[#allocation7 + $0x10] sm:$0xff]
    %v184 = vld [vmem:[#allocation7 + $0x18] sm:$0xff]
    %v185 = vld [vmem:[#allocation7 + $0x20] sm:$0xff]
    %v186 = vld [vmem:[#allocation7 + $0x28] sm:$0xff]
    %v187 = vld [vmem:[#allocation7 + $0x30] sm:$0xff]
    %v188 = vld [vmem:[#allocation7 + $0x38] sm:$0xff]
    %189 = vrot.lane.b32.xlu0 %v156, 96
    %v190 = vpop.permute.xlu0 %189
    %191 = vrot.lane.b32.xlu0 %v158, 96
    %v192 = vpop.permute.xlu0 %191
    %193 = vrot.lane.b32.xlu0 %v160, 96
    %v194 = vpop.permute.xlu0 %193
    %195 = vrot.lane.b32.xlu0 %v162, 96
    %v196 = vpop.permute.xlu0 %195
    %197 = vrot.lane.b32.xlu0 %v164, 96
    %v198 = vpop.permute.xlu0 %197
    %199 = vrot.lane.b32.xlu0 %v166, 96
    %v200 = vpop.permute.xlu0 %199
    %vm201 = vcmask 64512
    %v202 = vsel %vm201, %v143, 0
    %v204 = vsel %vm201, %v149, 0
    %v206 = vsel %vm201, %v156, 0
    %v208 = vsel %vm201, %v158, 0
    %v210 = vsel %vm201, %v160, 0
    %v212 = vsel %vm201, %v162, 0
    %v214 = vsel %vm201, %v164, 0
    %v216 = vsel %vm201, %v166, 0
    %v218 = vsel %vm201, %v168, 0
    %v220 = vsel %vm201, %v170, 0
    %v222 = vsel %vm201, %v190, 0
    %v224 = vsel %vm201, %v192, 0
    %v226 = vsel %vm201, %v194, 0
    %v228 = vsel %vm201, %v196, 0
    %v230 = vsel %vm201, %v198, 0
    %v232 = vsel %vm201, %v200, 0
    %234 = vmatprep.subr.mxu0 0.0
    %235 = vmatpush1.xpose.msra.mxu0 0.0
    %236 = vmatprep.subr.mxu0 0.0
    %237 = vmatpush1.xpose.msra.mxu0 0.0
    %238 = vmatprep.subr.mxu0 0.0
    %239 = vmatpush1.xpose.msra.mxu0 0.0
    %240 = vmatprep.subr.mxu0 0.0
    %241 = vmatpush1.xpose.msra.mxu0 0.0
    %242 = vmatprep.subr.mxu0 0.0
    %243 = vmatpush1.xpose.msra.mxu0 0.0
    %244 = vmatprep.subr.mxu0 0.0
    %245 = vmatpush1.xpose.msra.mxu0 0.0
    %246 = vmatprep.subr.mxu0 0.0
    %247 = vmatpush1.xpose.msra.mxu0 0.0
    %248 = vmatprep.subr.mxu0 0.0
    %249 = vmatpush1.xpose.msra.mxu0 0.0
    %250 = vmatprep.subr.mxu0 0.0
    %251 = vmatpush1.xpose.msra.mxu0 %v232
    %252 = vmatprep.subr.mxu0 0.0
    %253 = vmatpush1.xpose.msra.mxu0 %v230
    %254 = vmatprep.subr.mxu0 0.0
    %255 = vmatpush1.xpose.msra.mxu0 %v228
    %256 = vmatprep.subr.mxu0 0.0
    %257 = vmatpush1.xpose.msra.mxu0 %v226
    %258 = vmatprep.subr.mxu0 0.0
    %259 = vmatpush1.xpose.msra.mxu0 %v224
    %260 = vmatprep.subr.mxu0 0.0
    %261 = vmatpush1.xpose.msra.mxu0 %v222
    %262 = vmatprep.subr.mxu0 0.0
    %263 = vmatpush1.xpose.msra.mxu0 %v220
    %264 = vmatprep.subr.mxu0 0.0
    %265 = vmatpush1.xpose.msra.mxu0 %v218
    %266 = vmatprep.subr.mxu0 0.0
    %267 = vmatpush2.xpose.msra.mxu0 0.0
    %268 = vmatprep.subr.mxu0 0.0
    %269 = vmatpush2.xpose.msra.mxu0 0.0
    %270 = vmatprep.subr.mxu0 0.0
    %271 = vmatpush2.xpose.msra.mxu0 0.0
    %272 = vmatprep.subr.mxu0 0.0
    %273 = vmatpush2.xpose.msra.mxu0 0.0
    %274 = vmatprep.subr.mxu0 0.0
    %275 = vmatpush2.xpose.msra.mxu0 0.0
    %276 = vmatprep.subr.mxu0 0.0
    %277 = vmatpush2.xpose.msra.mxu0 0.0
    %278 = vmatprep.subr.mxu0 0.0
    %279 = vmatpush2.xpose.msra.mxu0 0.0
    %280 = vmatprep.subr.mxu0 0.0
    %281 = vmatpush2.xpose.msra.mxu0 0.0
    %282 = vmatprep.subr.mxu0 0.0
    %283 = vmatpush2.xpose.msra.mxu0 0.0
    %284 = vmatprep.subr.mxu0 0.0
    %285 = vmatpush2.xpose.msra.mxu0 0.0
    %286 = vmatprep.subr.mxu0 0.0
    %287 = vmatpush2.xpose.msra.mxu0 0.0
    %288 = vmatprep.subr.mxu0 0.0
    %289 = vmatpush2.xpose.msra.mxu0 0.0
    %290 = vmatprep.subr.mxu0 0.0
    %291 = vmatpush2.xpose.msra.mxu0 0.0
    %292 = vmatprep.subr.mxu0 0.0
    %293 = vmatpush2.xpose.msra.mxu0 0.0
    %294 = vmatprep.subr.mxu0 0.0
    %295 = vmatpush2.xpose.msra.mxu0 0.0
    %296 = vmatprep.subr.mxu0 0.0
    %297 = vmatpush2.xpose.msra.mxu0 0.0
    %298 = vmatprep.mubr.f32.mxu0 0.0
    %299 = vmatmul.mubr.f32.gmra.mxu0 %v202
    %v300 = vpop.f32.mrf.mxu0
    %v301 = vadd.f32 %v181, %v300
    %v302 = vpop.f32.mrf.mxu0
    %303 = vmatprep.mubr.f32.mxu0 0.0
    %304 = vmatmul.mubr.f32.gmra.mxu0 %v204
    %v305 = vpop.f32.mrf.mxu0
    %v306 = vadd.f32 %v182, %v305
    %v307 = vpop.f32.mrf.mxu0
    %308 = vmatprep.mubr.f32.mxu0 0.0
    %309 = vmatmul.mubr.f32.gmra.mxu0 %v206
    %v310 = vpop.f32.mrf.mxu0
    %v311 = vadd.f32 %v183, %v310
    %v312 = vpop.f32.mrf.mxu0
    %313 = vmatprep.mubr.f32.mxu0 0.0
    %314 = vmatmul.mubr.f32.gmra.mxu0 %v208
    %v315 = vpop.f32.mrf.mxu0
    %v316 = vadd.f32 %v184, %v315
    %v317 = vpop.f32.mrf.mxu0
    %318 = vmatprep.mubr.f32.mxu0 0.0
    %319 = vmatmul.mubr.f32.gmra.mxu0 %v210
    %v320 = vpop.f32.mrf.mxu0
    %v321 = vadd.f32 %v185, %v320
    %v322 = vpop.f32.mrf.mxu0
    %323 = vmatprep.mubr.f32.mxu0 0.0
    %324 = vmatmul.mubr.f32.gmra.mxu0 %v212
    %v325 = vpop.f32.mrf.mxu0
    %v326 = vadd.f32 %v186, %v325
    %v327 = vpop.f32.mrf.mxu0
    %328 = vmatprep.mubr.f32.mxu0 0.0
    %329 = vmatmul.mubr.f32.gmra.mxu0 %v214
    %v330 = vpop.f32.mrf.mxu0
    %v331 = vadd.f32 %v187, %v330
    %v332 = vpop.f32.mrf.mxu0
    %333 = vmatprep.mubr.f32.mxu0 0.0
    %334 = vmatmul.mubr.f32.gmra.mxu0 %v216
    %v335 = vpop.f32.mrf.mxu0
    %v336 = vadd.f32 %v188, %v335
    %v337 = vpop.f32.mrf.mxu0
    %338 = vdwg.mxu0
    %vm339 = vcmask 523264
    %v340 = vsel %vm339, %v301, -inf
    %341 = vmax.xlane.f32.xlu0 %v340
    %v342 = vpop.xlane.xlu0 %341
    %v343 = vsel %vm339, %v306, -inf
    %344 = vmax.xlane.f32.xlu0 %v343
    %v345 = vpop.xlane.xlu0 %344
    %v346 = vsel %vm339, %v311, -inf
    %347 = vmax.xlane.f32.xlu0 %v346
    %v348 = vpop.xlane.xlu0 %347
    %v349 = vsel %vm339, %v316, -inf
    %350 = vmax.xlane.f32.xlu0 %v349
    %v351 = vpop.xlane.xlu0 %350
    %v352 = vsel %vm339, %v321, -inf
    %353 = vmax.xlane.f32.xlu0 %v352
    %v354 = vpop.xlane.xlu0 %353
    %v355 = vsel %vm339, %v326, -inf
    %356 = vmax.xlane.f32.xlu0 %v355
    %v357 = vpop.xlane.xlu0 %356
    %v358 = vsel %vm339, %v331, -inf
    %359 = vmax.xlane.f32.xlu0 %v358
    %v360 = vpop.xlane.xlu0 %359
    %v361 = vsel %vm339, %v336, -inf
    %362 = vmax.xlane.f32.xlu0 %v361
    %v363 = vpop.xlane.xlu0 %362
    %v364 = vsub.f32 %v301, %v342
    %v365 = vsub.f32 %v306, %v345
    %v366 = vsub.f32 %v311, %v348
    %v367 = vsub.f32 %v316, %v351
    %v368 = vsub.f32 %v321, %v354
    %v369 = vsub.f32 %v326, %v357
    %v370 = vsub.f32 %v331, %v360
    %v371 = vsub.f32 %v336, %v363
    %v372 = vmul.f32 %v364, 1.442695
    %v373 = vpow.pop %v372
    %v374 = vmul.f32 %v365, 1.442695
    %v375 = vpow.pop %v374
    %v376 = vmul.f32 %v366, 1.442695
    %v377 = vpow.pop %v376
    %v378 = vmul.f32 %v367, 1.442695
    %v379 = vpow.pop %v378
    %v380 = vmul.f32 %v368, 1.442695
    %v381 = vpow.pop %v380
    %v382 = vmul.f32 %v369, 1.442695
    %v383 = vpow.pop %v382
    %v384 = vmul.f32 %v370, 1.442695
    %v385 = vpow.pop %v384
    %v386 = vmul.f32 %v371, 1.442695
    %v387 = vpow.pop %v386
    %v388 = vsel %vm339, %v373, 0.0
    %389 = vadd.xlane.f32.xlu0 %v388
    %v390 = vpop.xlane.xlu0 %389
    %v391 = vsel %vm339, %v375, 0.0
    %392 = vadd.xlane.f32.xlu0 %v391
    %v393 = vpop.xlane.xlu0 %392
    %v394 = vsel %vm339, %v377, 0.0
    %395 = vadd.xlane.f32.xlu0 %v394
    %v396 = vpop.xlane.xlu0 %395
    %v397 = vsel %vm339, %v379, 0.0
    %398 = vadd.xlane.f32.xlu0 %v397
    %v399 = vpop.xlane.xlu0 %398
    %v400 = vsel %vm339, %v381, 0.0
    %401 = vadd.xlane.f32.xlu0 %v400
    %v402 = vpop.xlane.xlu0 %401
    %v403 = vsel %vm339, %v383, 0.0
    %404 = vadd.xlane.f32.xlu0 %v403
    %v405 = vpop.xlane.xlu0 %404
    %v406 = vsel %vm339, %v385, 0.0
    %407 = vadd.xlane.f32.xlu0 %v406
    %v408 = vpop.xlane.xlu0 %407
    %v409 = vsel %vm339, %v387, 0.0
    %410 = vadd.xlane.f32.xlu0 %v409
    %v411 = vpop.xlane.xlu0 %410
    %v412 = vrcp.pop %v390
    %v413 = vmul.f32 %v373, %v412
    %v414 = vrcp.pop %v393
    %v415 = vmul.f32 %v375, %v414
    %v416 = vrcp.pop %v396
    %v417 = vmul.f32 %v377, %v416
    %v418 = vrcp.pop %v399
    %v419 = vmul.f32 %v379, %v418
    %v420 = vrcp.pop %v402
    %v421 = vmul.f32 %v381, %v420
    %v422 = vrcp.pop %v405
    %v423 = vmul.f32 %v383, %v422
    %v424 = vrcp.pop %v408
    %v425 = vmul.f32 %v385, %v424
    %v426 = vrcp.pop %v411
    %v427 = vmul.f32 %v387, %v426
    %428 = vrot.lane.b32.xlu0 %v143, 64
    %v429 = vpop.permute.xlu0 %428
    %430 = vrot.lane.b32.xlu0 %v149, 64
    %v431 = vpop.permute.xlu0 %430
    %432 = vrot.lane.b32.xlu0 %v168, 64
    %v433 = vpop.permute.xlu0 %432
    %434 = vrot.lane.b32.xlu0 %v170, 64
    %v435 = vpop.permute.xlu0 %434
    %436 = vrot.lane.b32.xlu0 %v174, 64
    %v437 = vpop.permute.xlu0 %436
    %438 = vrot.lane.b32.xlu0 %v176, 64
    %v439 = vpop.permute.xlu0 %438
    %440 = vrot.lane.b32.xlu0 %v178, 64
    %v441 = vpop.permute.xlu0 %440
    %442 = vrot.lane.b32.xlu0 %v180, 64
    %v443 = vpop.permute.xlu0 %442
    %v453 = vsel %vm339, %v413, 0
    %v456 = vsel %vm339, %v415, 0
    %v459 = vsel %vm339, %v417, 0
    %v462 = vsel %vm339, %v419, 0
    %v465 = vsel %vm339, %v421, 0
    %v468 = vsel %vm339, %v423, 0
    %v471 = vsel %vm339, %v425, 0
    %v474 = vsel %vm339, %v427, 0
    %476 = vmatprep.subr.mxu0 0.0
    %477 = vmatpush1.msra.mxu0 0.0
    %478 = vmatprep.subr.mxu0 0.0
    %479 = vmatpush1.msra.mxu0 0.0
    %480 = vmatprep.subr.mxu0 0.0
    %481 = vmatpush1.msra.mxu0 0.0
    %482 = vmatprep.subr.mxu0 0.0
    %483 = vmatpush1.msra.mxu0 0.0
    %484 = vmatprep.subr.mxu0 0.0
    %485 = vmatpush1.msra.mxu0 0.0
    %486 = vmatprep.subr.mxu0 0.0
    %487 = vmatpush1.msra.mxu0 0.0
    %488 = vmatprep.subr.mxu0 0.0
    %489 = vmatpush1.msra.mxu0 0.0
    %490 = vmatprep.subr.mxu0 0.0
    %491 = vmatpush1.msra.mxu0 0.0
    %492 = vmatprep.subr.mxu0 0.0
    %493 = vmatpush1.msra.mxu0 %v443
    %494 = vmatprep.subr.mxu0 0.0
    %495 = vmatpush1.msra.mxu0 %v441
    %496 = vmatprep.subr.mxu0 0.0
    %497 = vmatpush1.msra.mxu0 %v439
    %498 = vmatprep.subr.mxu0 0.0
    %499 = vmatpush1.msra.mxu0 %v437
    %500 = vmatprep.subr.mxu0 0.0
    %501 = vmatpush1.msra.mxu0 %v435
    %502 = vmatprep.subr.mxu0 0.0
    %503 = vmatpush1.msra.mxu0 %v433
    %504 = vmatprep.subr.mxu0 0.0
    %505 = vmatpush1.msra.mxu0 %v431
    %506 = vmatprep.subr.mxu0 0.0
    %507 = vmatpush1.msra.mxu0 %v429
    %508 = vmatprep.subr.mxu0 0.0
    %509 = vmatpush2.msra.mxu0 0.0
    %510 = vmatprep.subr.mxu0 0.0
    %511 = vmatpush2.msra.mxu0 0.0
    %512 = vmatprep.subr.mxu0 0.0
    %513 = vmatpush2.msra.mxu0 0.0
    %514 = vmatprep.subr.mxu0 0.0
    %515 = vmatpush2.msra.mxu0 0.0
    %516 = vmatprep.subr.mxu0 0.0
    %517 = vmatpush2.msra.mxu0 0.0
    %518 = vmatprep.subr.mxu0 0.0
    %519 = vmatpush2.msra.mxu0 0.0
    %520 = vmatprep.subr.mxu0 0.0
    %521 = vmatpush2.msra.mxu0 0.0
    %522 = vmatprep.subr.mxu0 0.0
    %523 = vmatpush2.msra.mxu0 0.0
    %524 = vmatprep.subr.mxu0 0.0
    %525 = vmatpush2.msra.mxu0 0.0
    %526 = vmatprep.subr.mxu0 0.0
    %527 = vmatpush2.msra.mxu0 0.0
    %528 = vmatprep.subr.mxu0 0.0
    %529 = vmatpush2.msra.mxu0 0.0
    %530 = vmatprep.subr.mxu0 0.0
    %531 = vmatpush2.msra.mxu0 0.0
    %532 = vmatprep.subr.mxu0 0.0
    %533 = vmatpush2.msra.mxu0 0.0
    %534 = vmatprep.subr.mxu0 0.0
    %535 = vmatpush2.msra.mxu0 0.0
    %536 = vmatprep.subr.mxu0 0.0
    %537 = vmatpush2.msra.mxu0 0.0
    %538 = vmatprep.subr.mxu0 0.0
    %539 = vmatpush2.msra.mxu0 0.0
    %540 = vmatprep.mubr.f32.mxu0 0.0
    %541 = vmatmul.mubr.f32.gmra.mxu0 %v453
    %v542 = vpop.f32.mrf.mxu0
    %v543 = vadd.f32 0.0, %v542
    %v544 = vpop.f32.mrf.mxu0
    %545 = vmatprep.mubr.f32.mxu0 0.0
    %546 = vmatmul.mubr.f32.gmra.mxu0 %v456
    %v547 = vpop.f32.mrf.mxu0
    %v548 = vadd.f32 0.0, %v547
    %v549 = vpop.f32.mrf.mxu0
    %550 = vmatprep.mubr.f32.mxu0 0.0
    %551 = vmatmul.mubr.f32.gmra.mxu0 %v459
    %v552 = vpop.f32.mrf.mxu0
    %v553 = vadd.f32 0.0, %v552
    %v554 = vpop.f32.mrf.mxu0
    %555 = vmatprep.mubr.f32.mxu0 0.0
    %556 = vmatmul.mubr.f32.gmra.mxu0 %v462
    %v557 = vpop.f32.mrf.mxu0
    %v558 = vadd.f32 0.0, %v557
    %v559 = vpop.f32.mrf.mxu0
    %560 = vmatprep.mubr.f32.mxu0 0.0
    %561 = vmatmul.mubr.f32.gmra.mxu0 %v465
    %v562 = vpop.f32.mrf.mxu0
    %v563 = vadd.f32 0.0, %v562
    %v564 = vpop.f32.mrf.mxu0
    %565 = vmatprep.mubr.f32.mxu0 0.0
    %566 = vmatmul.mubr.f32.gmra.mxu0 %v468
    %v567 = vpop.f32.mrf.mxu0
    %v568 = vadd.f32 0.0, %v567
    %v569 = vpop.f32.mrf.mxu0
    %570 = vmatprep.mubr.f32.mxu0 0.0
    %571 = vmatmul.mubr.f32.gmra.mxu0 %v471
    %v572 = vpop.f32.mrf.mxu0
    %v573 = vadd.f32 0.0, %v572
    %v574 = vpop.f32.mrf.mxu0
    %575 = vmatprep.mubr.f32.mxu0 0.0
    %576 = vmatmul.mubr.f32.gmra.mxu0 %v474
    %v577 = vpop.f32.mrf.mxu0
    %v578 = vadd.f32 0.0, %v577
    %v579 = vpop.f32.mrf.mxu0
    %580 = vdwg.mxu0
    %v581 = vadd.f32 %v543, %v553
    %v582 = vadd.f32 %v548, %v558
    %v583 = vadd.f32 %v581, %v563
    %v584 = vadd.f32 %v582, %v568
    %v585 = vadd.f32 %v583, %v573
    %v586 = vadd.f32 %v584, %v578
    %v587 = vld [vmem:[%s3] sm:$0x1]
    %v589 = vlaneseq
    %v590 = vshrl.u32 %v589, 7
    %v591 = vsub.s32 0, %v590
    %v592 = vrot.slane %v587, %v591
    %v594 = vadd.f32 %v585, %v592
    %v595 = vadd.f32 %v586, %v592
    %596 = vst.msk [vmem:[#allocation8] sm:$0xff] %vm69, %v594
    %597 = vst.msk [vmem:[#allocation8 + $0x8] sm:$0xff] %vm69, %v595
    // Predicated region
    $region30: #{multi_head_attention.1} parent=1 // pred_check
      _
    $region31: #{multi_head_attention.1} parent=1 // pred_check_branch
      %599 = sbr.rel (0) target = $region33
    $region32: #{multi_head_attention.1} parent=1 // pred_region
      %s601 = ssub.s32 256, 256
      %602 = vsyncadd [#allocation4], %s601
      %s603 = sshll.u32 [#allocation8], 4
      %s604 = int_to_ptr.vmem [resolvable:$true] %s603
      %609 = dma.vmem_to_hbm [thread:$0]  %s604, 256, %s4, [#allocation4], 128, 128, 8
    $region33: #{multi_head_attention.1} parent=1 // pred_fallthru
      _
    // Predicated region
    $region34: #{multi_head_attention.1} parent=1 // pred_check
      _
    $region35: #{multi_head_attention.1} parent=1 // pred_check_branch
      %611 = sbr.rel (0) target = $region37
    $region36: #{multi_head_attention.1} parent=1 // pred_region
      %612 = dma.done [#allocation4], 256
    $region37: #{multi_head_attention.1} parent=1 // pred_fallthru
      _
    %613 = vsyncpa [#allocation3], 1
    %614 = vsyncpa [#allocation6], 1
    %615 = vsyncpa [#allocation4], 1

</llo_original>
